<compile_context>
chip_gen: v7x
topology: tpu7x:2x2x1
jax: 0.10.0
libtpu: 0.0.40
codegen_flags: <defaults>
</compile_context>

<pallas_src>
import jax
import jax.numpy as jnp
from jax.experimental import pallas as pl
from jax.experimental.pallas import tpu as pltpu


def _mode_mix_kernel(x_ref, w_ref, o_ref):
    """Single-invocation complex mode mixing.

    x_ref: (B, l, 2ck)   stacked [real | imag] truncated spectrum
    w_ref: (l, 2ck, 2ck) stacked complex weights [[wr, wi], [-wi, wr]] per mode
    o_ref: (B, l*2ck)    per-mode [real | imag] blocks, one lane-dense store
    """
    x = x_ref[...]                      # tiny (B, l, 2ck) block, lives in vregs
    n_modes = x.shape[1]
    outs = []
    for m in range(n_modes):            # static unroll: MXU pushes pipeline back-to-back
        outs.append(
            jnp.dot(x[:, m, :], w_ref[m], preferred_element_type=jnp.float32))
    o_ref[...] = jnp.concatenate(outs, axis=-1)


def _pallas_mode_mix(x_stacked, w_stacked):
    """x_stacked: (B, l, 2ck); w_stacked: (l, 2ck, 2ck) -> (B, l*2ck) float32."""
    B, l, two_ck = x_stacked.shape
    flops = 2 * B * l * two_ck * two_ck
    bytes_accessed = 4 * (x_stacked.size + w_stacked.size + B * l * two_ck)
    return pl.pallas_call(
        _mode_mix_kernel,
        out_shape=jax.ShapeDtypeStruct((B, l * two_ck), jnp.float32),
        in_specs=[pl.BlockSpec(memory_space=pltpu.MemorySpace.VMEM),
                  pl.BlockSpec(memory_space=pltpu.MemorySpace.VMEM)],
        out_specs=pl.BlockSpec(memory_space=pltpu.MemorySpace.VMEM),
        cost_estimate=pl.CostEstimate(flops=flops, transcendentals=0,
                                      bytes_accessed=bytes_accessed),
    )(x_stacked, w_stacked)


def sparse_kernel_ft1d(x, w_real, w_imag, modes1):
    """Forward pass of sparseKernelFT1d.

    x:       (B, N, c, k) float32
    w_real:  (c*k, c*k, modes1) float32  (real part of weights1)
    w_imag:  (c*k, c*k, modes1) float32  (imag part of weights1)
    returns: (B, N, c, k) float32
    """
    B, N, c, k = x.shape
    ck = c * k
    F = N // 2 + 1
    l = min(modes1, F)

    # (B, N, c, k) -> (B, N, ck); FFT along the sequence axis (axis=1).
    xv = x.reshape(B, N, ck)
    x_fft = jnp.fft.rfft(xv, axis=1)                      # (B, F, ck) complex64
    x_low = x_fft[:, :l, :]                               # (B, l, ck)

    # Fused kernel input: [real | imag] on the lane axis.
    x_stacked = jnp.concatenate(
        [jnp.real(x_low), jnp.imag(x_low)], axis=-1)      # (B, l, 2ck) f32

    # Stacked complex weights, built once: W_m = [[wr, wi], [-wi, wr]].
    wr = jnp.transpose(w_real[:, :, :l], (2, 0, 1))       # (l, ck_in, ck_out)
    wi = jnp.transpose(w_imag[:, :, :l], (2, 0, 1))
    w_stacked = jnp.concatenate(
        [jnp.concatenate([wr, wi], axis=-1),
         jnp.concatenate([-wi, wr], axis=-1)], axis=1)    # (l, 2ck, 2ck)

    y_flat = _pallas_mode_mix(x_stacked, w_stacked)       # (B, l*2ck)
    y = y_flat.reshape(B, l, 2, ck)
    out_low = jax.lax.complex(y[:, :, 0, :], y[:, :, 1, :])   # (B, l, ck) c64

    # Pad truncated spectrum up to F modes (no zeros+scatter), inverse FFT
    # along axis=1 -> already (B, N, ck), no post-kernel transpose needed.
    out_ft = jnp.pad(out_low, ((0, 0), (0, F - l), (0, 0)))
    y_time = jnp.fft.irfft(out_ft, n=N, axis=1)           # (B, N, ck)
    return y_time.reshape(B, N, c, k).astype(x.dtype)


def _reference(x, w_real, w_imag, modes1):
    """Pure-JAX reference mirroring the PyTorch forward exactly."""
    B, N, c, k = x.shape
    ck = c * k
    F = N // 2 + 1
    l = min(modes1, F)
    xv = jnp.transpose(x.reshape(B, N, ck), (0, 2, 1))
    x_fft = jnp.fft.rfft(xv, axis=-1)
    w = (w_real + 1j * w_imag).astype(jnp.complex64)
    out_low = jnp.einsum('bix,iox->box', x_fft[:, :, :l], w[:, :, :l])
    out_ft = jnp.zeros((B, ck, F), dtype=jnp.complex64).at[:, :, :l].set(out_low)
    y = jnp.fft.irfft(out_ft, n=N, axis=-1)
    return jnp.transpose(y, (0, 2, 1)).reshape(B, N, c, k).astype(x.dtype)


if __name__ == "__main__":
    # Module config: k=8, alpha(modes1)=12, c=4  ->  ck = 32, 2ck = 64
    k = 8
    c = 4
    alpha = 12
    B, N = 2, 16
    ck = c * k

    key = jax.random.PRNGKey(0)
    kx, kwr, kwi = jax.random.split(key, 3)

    x = jax.random.normal(kx, (B, N, c, k), dtype=jnp.float32)

    # weights1 = scale * torch.rand(ck, ck, modes1, dtype=cfloat):
    # real and imaginary parts each uniform in [0, 1), scaled.
    scale = 1.0 / (c * k * c * k)
    w_real = scale * jax.random.uniform(kwr, (ck, ck, alpha), dtype=jnp.float32)
    w_imag = scale * jax.random.uniform(kwi, (ck, ck, alpha), dtype=jnp.float32)

    fwd = jax.jit(sparse_kernel_ft1d, static_argnums=(3,))
    out = jax.block_until_ready(fwd(x, w_real, w_imag, alpha))

    ref = jax.block_until_ready(_reference(x, w_real, w_imag, alpha))
    assert out.shape == (B, N, c, k)
    assert jnp.allclose(out, ref, atol=1e-4, rtol=1e-4), "mismatch vs reference"

    print("KERNEL_OK")
</pallas_src>

<mosaic_0001>
module attributes {stable_mosaic.version = 11 : i64} {
  func.func @_mode_mix_kernel(%arg0: memref<2x9x64xf32, #tpu.memory_space<vmem>>, %arg1: memref<9x64x64xf32, #tpu.memory_space<vmem>>, %arg2: memref<2x576xf32, #tpu.memory_space<vmem>>) attributes {dimension_semantics = [], scalar_prefetch = 0 : i64, scratch_operands = 0 : i64, tpu.core_type = #tpu.core_type<tc>} {
    %c0 = arith.constant 0 : index
    %c0_0 = arith.constant 0 : index
    %c0_1 = arith.constant 0 : index
    %0 = vector.load %arg0[%c0, %c0_0, %c0_1] : memref<2x9x64xf32, #tpu.memory_space<vmem>>, vector<2x9x64xf32>
    %1 = vector.extract_strided_slice %0 {offsets = [0, 0, 0], sizes = [2, 1, 64], strides = [1, 1, 1]} : vector<2x9x64xf32> to vector<2x1x64xf32>
    %2 = vector.shape_cast %1 : vector<2x1x64xf32> to vector<2x64xf32>
    %c0_2 = arith.constant 0 : index
    %c0_3 = arith.constant 0 : index
    %c0_4 = arith.constant 0 : index
    %3 = vector.load %arg1[%c0_2, %c0_3, %c0_4] : memref<9x64x64xf32, #tpu.memory_space<vmem>>, vector<1x64x64xf32>
    %4 = vector.shape_cast %3 : vector<1x64x64xf32> to vector<64x64xf32>
    %cst = arith.constant dense<0.000000e+00> : vector<2x64xf32>
    %5 = tpu.matmul %2, %4, %cst {dimension_numbers = #tpu.dot_dimension_numbers<[1], [0], [0], [1], [0, 0, 1, 1], [], []>} : vector<2x64xf32>, vector<64x64xf32>, vector<2x64xf32> -> vector<2x64xf32>
    %6 = vector.extract_strided_slice %0 {offsets = [0, 1, 0], sizes = [2, 1, 64], strides = [1, 1, 1]} : vector<2x9x64xf32> to vector<2x1x64xf32>
    %7 = vector.shape_cast %6 : vector<2x1x64xf32> to vector<2x64xf32>
    %c1 = arith.constant 1 : index
    %c0_5 = arith.constant 0 : index
    %c0_6 = arith.constant 0 : index
    %8 = vector.load %arg1[%c1, %c0_5, %c0_6] : memref<9x64x64xf32, #tpu.memory_space<vmem>>, vector<1x64x64xf32>
    %9 = vector.shape_cast %8 : vector<1x64x64xf32> to vector<64x64xf32>
    %cst_7 = arith.constant dense<0.000000e+00> : vector<2x64xf32>
    %10 = tpu.matmul %7, %9, %cst_7 {dimension_numbers = #tpu.dot_dimension_numbers<[1], [0], [0], [1], [0, 0, 1, 1], [], []>} : vector<2x64xf32>, vector<64x64xf32>, vector<2x64xf32> -> vector<2x64xf32>
    %11 = vector.extract_strided_slice %0 {offsets = [0, 2, 0], sizes = [2, 1, 64], strides = [1, 1, 1]} : vector<2x9x64xf32> to vector<2x1x64xf32>
    %12 = vector.shape_cast %11 : vector<2x1x64xf32> to vector<2x64xf32>
    %c2 = arith.constant 2 : index
    %c0_8 = arith.constant 0 : index
    %c0_9 = arith.constant 0 : index
    %13 = vector.load %arg1[%c2, %c0_8, %c0_9] : memref<9x64x64xf32, #tpu.memory_space<vmem>>, vector<1x64x64xf32>
    %14 = vector.shape_cast %13 : vector<1x64x64xf32> to vector<64x64xf32>
    %cst_10 = arith.constant dense<0.000000e+00> : vector<2x64xf32>
    %15 = tpu.matmul %12, %14, %cst_10 {dimension_numbers = #tpu.dot_dimension_numbers<[1], [0], [0], [1], [0, 0, 1, 1], [], []>} : vector<2x64xf32>, vector<64x64xf32>, vector<2x64xf32> -> vector<2x64xf32>
    %16 = vector.extract_strided_slice %0 {offsets = [0, 3, 0], sizes = [2, 1, 64], strides = [1, 1, 1]} : vector<2x9x64xf32> to vector<2x1x64xf32>
    %17 = vector.shape_cast %16 : vector<2x1x64xf32> to vector<2x64xf32>
    %c3 = arith.constant 3 : index
    %c0_11 = arith.constant 0 : index
    %c0_12 = arith.constant 0 : index
    %18 = vector.load %arg1[%c3, %c0_11, %c0_12] : memref<9x64x64xf32, #tpu.memory_space<vmem>>, vector<1x64x64xf32>
    %19 = vector.shape_cast %18 : vector<1x64x64xf32> to vector<64x64xf32>
    %cst_13 = arith.constant dense<0.000000e+00> : vector<2x64xf32>
    %20 = tpu.matmul %17, %19, %cst_13 {dimension_numbers = #tpu.dot_dimension_numbers<[1], [0], [0], [1], [0, 0, 1, 1], [], []>} : vector<2x64xf32>, vector<64x64xf32>, vector<2x64xf32> -> vector<2x64xf32>
    %21 = vector.extract_strided_slice %0 {offsets = [0, 4, 0], sizes = [2, 1, 64], strides = [1, 1, 1]} : vector<2x9x64xf32> to vector<2x1x64xf32>
    %22 = vector.shape_cast %21 : vector<2x1x64xf32> to vector<2x64xf32>
    %c4 = arith.constant 4 : index
    %c0_14 = arith.constant 0 : index
    %c0_15 = arith.constant 0 : index
    %23 = vector.load %arg1[%c4, %c0_14, %c0_15] : memref<9x64x64xf32, #tpu.memory_space<vmem>>, vector<1x64x64xf32>
    %24 = vector.shape_cast %23 : vector<1x64x64xf32> to vector<64x64xf32>
    %cst_16 = arith.constant dense<0.000000e+00> : vector<2x64xf32>
    %25 = tpu.matmul %22, %24, %cst_16 {dimension_numbers = #tpu.dot_dimension_numbers<[1], [0], [0], [1], [0, 0, 1, 1], [], []>} : vector<2x64xf32>, vector<64x64xf32>, vector<2x64xf32> -> vector<2x64xf32>
    %26 = vector.extract_strided_slice %0 {offsets = [0, 5, 0], sizes = [2, 1, 64], strides = [1, 1, 1]} : vector<2x9x64xf32> to vector<2x1x64xf32>
    %27 = vector.shape_cast %26 : vector<2x1x64xf32> to vector<2x64xf32>
    %c5 = arith.constant 5 : index
    %c0_17 = arith.constant 0 : index
    %c0_18 = arith.constant 0 : index
    %28 = vector.load %arg1[%c5, %c0_17, %c0_18] : memref<9x64x64xf32, #tpu.memory_space<vmem>>, vector<1x64x64xf32>
    %29 = vector.shape_cast %28 : vector<1x64x64xf32> to vector<64x64xf32>
    %cst_19 = arith.constant dense<0.000000e+00> : vector<2x64xf32>
    %30 = tpu.matmul %27, %29, %cst_19 {dimension_numbers = #tpu.dot_dimension_numbers<[1], [0], [0], [1], [0, 0, 1, 1], [], []>} : vector<2x64xf32>, vector<64x64xf32>, vector<2x64xf32> -> vector<2x64xf32>
    %31 = vector.extract_strided_slice %0 {offsets = [0, 6, 0], sizes = [2, 1, 64], strides = [1, 1, 1]} : vector<2x9x64xf32> to vector<2x1x64xf32>
    %32 = vector.shape_cast %31 : vector<2x1x64xf32> to vector<2x64xf32>
    %c6 = arith.constant 6 : index
    %c0_20 = arith.constant 0 : index
    %c0_21 = arith.constant 0 : index
    %33 = vector.load %arg1[%c6, %c0_20, %c0_21] : memref<9x64x64xf32, #tpu.memory_space<vmem>>, vector<1x64x64xf32>
    %34 = vector.shape_cast %33 : vector<1x64x64xf32> to vector<64x64xf32>
    %cst_22 = arith.constant dense<0.000000e+00> : vector<2x64xf32>
    %35 = tpu.matmul %32, %34, %cst_22 {dimension_numbers = #tpu.dot_dimension_numbers<[1], [0], [0], [1], [0, 0, 1, 1], [], []>} : vector<2x64xf32>, vector<64x64xf32>, vector<2x64xf32> -> vector<2x64xf32>
    %36 = vector.extract_strided_slice %0 {offsets = [0, 7, 0], sizes = [2, 1, 64], strides = [1, 1, 1]} : vector<2x9x64xf32> to vector<2x1x64xf32>
    %37 = vector.shape_cast %36 : vector<2x1x64xf32> to vector<2x64xf32>
    %c7 = arith.constant 7 : index
    %c0_23 = arith.constant 0 : index
    %c0_24 = arith.constant 0 : index
    %38 = vector.load %arg1[%c7, %c0_23, %c0_24] : memref<9x64x64xf32, #tpu.memory_space<vmem>>, vector<1x64x64xf32>
    %39 = vector.shape_cast %38 : vector<1x64x64xf32> to vector<64x64xf32>
    %cst_25 = arith.constant dense<0.000000e+00> : vector<2x64xf32>
    %40 = tpu.matmul %37, %39, %cst_25 {dimension_numbers = #tpu.dot_dimension_numbers<[1], [0], [0], [1], [0, 0, 1, 1], [], []>} : vector<2x64xf32>, vector<64x64xf32>, vector<2x64xf32> -> vector<2x64xf32>
    %41 = vector.extract_strided_slice %0 {offsets = [0, 8, 0], sizes = [2, 1, 64], strides = [1, 1, 1]} : vector<2x9x64xf32> to vector<2x1x64xf32>
    %42 = vector.shape_cast %41 : vector<2x1x64xf32> to vector<2x64xf32>
    %c8 = arith.constant 8 : index
    %c0_26 = arith.constant 0 : index
    %c0_27 = arith.constant 0 : index
    %43 = vector.load %arg1[%c8, %c0_26, %c0_27] : memref<9x64x64xf32, #tpu.memory_space<vmem>>, vector<1x64x64xf32>
    %44 = vector.shape_cast %43 : vector<1x64x64xf32> to vector<64x64xf32>
    %cst_28 = arith.constant dense<0.000000e+00> : vector<2x64xf32>
    %45 = tpu.matmul %42, %44, %cst_28 {dimension_numbers = #tpu.dot_dimension_numbers<[1], [0], [0], [1], [0, 0, 1, 1], [], []>} : vector<2x64xf32>, vector<64x64xf32>, vector<2x64xf32> -> vector<2x64xf32>
    %46 = tpu.concatenate %5, %10, %15, %20, %25, %30, %35, %40, %45 in 1 : vector<2x64xf32>, vector<2x64xf32>, vector<2x64xf32>, vector<2x64xf32>, vector<2x64xf32>, vector<2x64xf32>, vector<2x64xf32>, vector<2x64xf32>, vector<2x64xf32> -> vector<2x576xf32>
    %c0_29 = arith.constant 0 : index
    %c0_30 = arith.constant 0 : index
    %47 = vector.load %arg2[%c0_29, %c0_30] : memref<2x576xf32, #tpu.memory_space<vmem>>, vector<2x576xf32>
    tpu.vector_store %arg2[%c0_29, %c0_30], %46 {strides = array<i32>} : memref<2x576xf32, #tpu.memory_space<vmem>>, vector<2x576xf32>,
    return
  }
}

</mosaic_0001>

<llo_original>
// kernel: reverse.1
$region0: #{reverse.1}
  %s0 = inlined_call_operand.vmem [shape: f32[2,32,7], index: 0, kind: input, shape index: {}]
  %s1 = inlined_call_operand.vmem [shape: f32[2,32,7], index: 1, kind: output, shape index: {}]
  $region1: #{reverse.1} parent=0
    #allocation0 [shape = 'u8[16384]{0}', space=vmem, size = 0x4000, scoped, tag = 'operand span for operand 0']
    #allocation1 [shape = 'u8[8192]{0}', space=vmem, size = 0x2000, scoped, tag = 'operand span for operand 1']
    %s2 = scalar_lea.vmem [#allocation0], 8
    // Predicated region
    $region2: #{reverse.1} parent=1 // pred_check
      _
    $region3: #{reverse.1} parent=1 // pred_check_branch
      %4 = sbr.rel (0) target = $region5
    $region4: #{reverse.1} parent=1 // pred_region
      // Predicated region
      $region6: #{reverse.1} parent=4 // pred_check
        _
      $region7: #{reverse.1} parent=4 // pred_check_branch
        %6 = sbr.rel (0) target = $region9
      $region8: #{reverse.1} parent=4 // pred_region
        // Predicated region
        $region21: #{reverse.1} parent=8 // pred_check
          _
        $region22: #{reverse.1} parent=8 // pred_check_branch
          %23 = sbr.rel (0) target = $region24
        $region23: #{reverse.1} parent=8 // pred_region
          loop: start=0, step=1, limit=1
          $region25: #{reverse.1} parent=23 // loop_pre_header
            _
          $region26: #{reverse.1} parent=23 // loop_header
            %s25 = sphi 0, %s29
            %p26 = scmp.ge.s32.totalorder %s25, 1
            %s30 = sphi %s0, %s0
            %s31 = sphi %s2, %s2
          $region27: #{reverse.1} parent=23 // loop_header_branch
            %28 = sbr.rel (%p26) target = $region31
          $region28: #{reverse.1} parent=23 // loop_body
            %v32 = vld [vmem:[%s30] sm:$0xff]
            %33 = vst [vmem:[%s31] sm:$0xff] %v32
            %v34 = vld [vmem:[%s30 + $0x8] sm:$0xff]
            %35 = vst [vmem:[%s31 + $0x10] sm:$0xff] %v34
          $region29: #{reverse.1} parent=23 // loop_footer
            %s29 = sadd.s32 1, %s25
          $region30: #{reverse.1} parent=23 // loop_footer_branch
            %24 = sbr.rel target = $region26
          $region31: #{reverse.1} parent=23 // loop_exit
            _
        $region24: #{reverse.1} parent=8 // pred_fallthru
          _
        // Predicated region
        $region32: #{reverse.1} parent=8 // pred_check
          _
        $region33: #{reverse.1} parent=8 // pred_check_branch
          %37 = sbr.rel target = $region35
        $region34: #{reverse.1} parent=8 // pred_region
          _
        $region35: #{reverse.1} parent=8 // pred_fallthru
          _
      $region9: #{reverse.1} parent=4 // pred_fallthru
        _
      // Predicated region
      $region10: #{reverse.1} parent=4 // pred_check
        _
      $region11: #{reverse.1} parent=4 // pred_check_branch
        %8 = sbr.rel target = $region13
      $region12: #{reverse.1} parent=4 // pred_region
        loop: start=0, step=1, limit=1
        $region14: #{reverse.1} parent=12 // loop_pre_header
          _
        $region15: #{reverse.1} parent=12 // loop_header
          %s11 = sphi 0, %s15
          %p12 = scmp.ge.s32.totalorder %s11, 1
          %s16 = sphi %s0, %s0
          %s17 = sphi %s2, %s2
        $region16: #{reverse.1} parent=12 // loop_header_branch
          %14 = sbr.rel (%p12) target = $region20
        $region17: #{reverse.1} parent=12 // loop_body
          %v18 = vld [vmem:[%s16] sm:$0xff]
          %19 = vst [vmem:[%s17] sm:$0xff] %v18
          %v20 = vld [vmem:[%s16 + $0x8] sm:$0xff]
          %21 = vst [vmem:[%s17 + $0x10] sm:$0xff] %v20
        $region18: #{reverse.1} parent=12 // loop_footer
          %s15 = sadd.s32 1, %s11
        $region19: #{reverse.1} parent=12 // loop_footer_branch
          %10 = sbr.rel target = $region15
        $region20: #{reverse.1} parent=12 // loop_exit
          _
      $region13: #{reverse.1} parent=4 // pred_fallthru
        _
    $region5: #{reverse.1} parent=1 // pred_fallthru
      _
    %38 = vnop
    %s39 = scalar_lea.vmem [#allocation0], 7
    %v40 = vld [vmem:[%s39] ss:$-1 sm:$0xff]
    %v41 = vrot.slane %v40, 1
    %42 = vst [vmem:[#allocation1] sm:$0xff] %v41
    %s43 = scalar_lea.vmem [#allocation0], 8
    %s44 = scalar_lea.vmem %s43, 7 [#allocation0]
    %v45 = vld [vmem:[%s44] ss:$-1 sm:$0xff]
    %v46 = vrot.slane %v45, 1
    %v47 = vlaneseq
    %v48 = vshrl.u32 %v47, 7
    %vm49 = vcmp.lt.s32.totalorder %v48, 7
    %50 = vst.msk [vmem:[#allocation1] sm:$0xff] %vm49, %v46
    %s51 = scalar_lea.vmem [#allocation1], 8
    %s52 = scalar_lea.vmem [#allocation0], 16
    %s53 = scalar_lea.vmem %s52, 7 [#allocation0]
    %v54 = vld [vmem:[%s53] ss:$-1 sm:$0xff]
    %v55 = vrot.slane %v54, 1
    %56 = vst [vmem:[%s51] sm:$0xff] %v55
    %s57 = scalar_lea.vmem %s52, 8 [#allocation0]
    %s58 = scalar_lea.vmem %s57, 7 [#allocation0]
    %v59 = vld [vmem:[%s58] ss:$-1 sm:$0xff]
    %v60 = vrot.slane %v59, 1
    %v61 = vlaneseq
    %v62 = vshrl.u32 %v61, 7
    %vm63 = vcmp.lt.s32.totalorder %v62, 7
    %64 = vst.msk [vmem:[%s51] sm:$0xff] %vm63, %v60
    // Predicated region
    $region36: #{reverse.1} parent=1 // pred_check
      _
    $region37: #{reverse.1} parent=1 // pred_check_branch
      %66 = sbr.rel (0) target = $region39
    $region38: #{reverse.1} parent=1 // pred_region
      // Predicated region
      $region40: #{reverse.1} parent=38 // pred_check
        _
      $region41: #{reverse.1} parent=38 // pred_check_branch
        %68 = sbr.rel (0) target = $region43
      $region42: #{reverse.1} parent=38 // pred_region
        // Predicated region
        $region55: #{reverse.1} parent=42 // pred_check
          _
        $region56: #{reverse.1} parent=42 // pred_check_branch
          %85 = sbr.rel (0) target = $region58
        $region57: #{reverse.1} parent=42 // pred_region
          loop: start=0, step=1, limit=1
          $region59: #{reverse.1} parent=57 // loop_pre_header
            _
          $region60: #{reverse.1} parent=57 // loop_header
            %s87 = sphi 0, %s91
            %p88 = scmp.ge.s32.totalorder %s87, 1
            %s92 = sphi [#allocation1], [#allocation1]
            %s93 = sphi %s1, %s1
          $region61: #{reverse.1} parent=57 // loop_header_branch
            %90 = sbr.rel (%p88) target = $region65
          $region62: #{reverse.1} parent=57 // loop_body
            %v94 = vld [vmem:[%s92] sm:$0xff]
            %95 = vst [vmem:[%s93] sm:$0xff] %v94
            %v96 = vld [vmem:[%s92 + $0x8] sm:$0xff]
            %97 = vst [vmem:[%s93 + $0x8] sm:$0xff] %v96
          $region63: #{reverse.1} parent=57 // loop_footer
            %s91 = sadd.s32 1, %s87
          $region64: #{reverse.1} parent=57 // loop_footer_branch
            %86 = sbr.rel target = $region60
          $region65: #{reverse.1} parent=57 // loop_exit
            _
        $region58: #{reverse.1} parent=42 // pred_fallthru
          _
        // Predicated region
        $region66: #{reverse.1} parent=42 // pred_check
          _
        $region67: #{reverse.1} parent=42 // pred_check_branch
          %99 = sbr.rel target = $region69
        $region68: #{reverse.1} parent=42 // pred_region
          _
        $region69: #{reverse.1} parent=42 // pred_fallthru
          _
      $region43: #{reverse.1} parent=38 // pred_fallthru
        _
      // Predicated region
      $region44: #{reverse.1} parent=38 // pred_check
        _
      $region45: #{reverse.1} parent=38 // pred_check_branch
        %70 = sbr.rel target = $region47
      $region46: #{reverse.1} parent=38 // pred_region
        loop: start=0, step=1, limit=1
        $region48: #{reverse.1} parent=46 // loop_pre_header
          _
        $region49: #{reverse.1} parent=46 // loop_header
          %s73 = sphi 0, %s77
          %p74 = scmp.ge.s32.totalorder %s73, 1
          %s78 = sphi [#allocation1], [#allocation1]
          %s79 = sphi %s1, %s1
        $region50: #{reverse.1} parent=46 // loop_header_branch
          %76 = sbr.rel (%p74) target = $region54
        $region51: #{reverse.1} parent=46 // loop_body
          %v80 = vld [vmem:[%s78] sm:$0xff]
          %81 = vst [vmem:[%s79] sm:$0xff] %v80
          %v82 = vld [vmem:[%s78 + $0x8] sm:$0xff]
          %83 = vst [vmem:[%s79 + $0x8] sm:$0xff] %v82
        $region52: #{reverse.1} parent=46 // loop_footer
          %s77 = sadd.s32 1, %s73
        $region53: #{reverse.1} parent=46 // loop_footer_branch
          %72 = sbr.rel target = $region49
        $region54: #{reverse.1} parent=46 // loop_exit
          _
      $region47: #{reverse.1} parent=38 // pred_fallthru
        _
    $region39: #{reverse.1} parent=1 // pred_fallthru
      _
    %100 = vnop

// kernel: sparse_kernel_ft1d.1
$region0: #{sparse_kernel_ft1d.1}
  #allocation0 [shape = 'u32[]', space=smem, size = 0x4, offset = 0x4, fixed_abs, tag = 'smem constant byte address 0x4 - core index']
  #allocation1 [shape = 'u32[144,128]{1,0:T(1,128)}', space=vmem, size = 0x12000, scoped, tag = 'internal scratch']
  %s0 = inlined_call_operand.vmem [shape: f32[2,9,64], index: 0, kind: input, shape index: {}]
  %s1 = inlined_call_operand.vmem [shape: f32[9,64,64], index: 1, kind: input, shape index: {}]
  %s2 = inlined_call_operand.vmem [shape: f32[2,576], index: 2, kind: output, shape index: {}]
  %s3 = sld [smem:[#allocation0]]
  $region18: #{sparse_kernel_ft1d.1} parent=0
    _
  %s5 = ssub.s32 1, %s3
  %s6 = scalar_select 0, %s5, %s3
  // Predicated region
  $region2: #{sparse_kernel_ft1d.1} parent=0 // pred_check
    _
  $region3: #{sparse_kernel_ft1d.1} parent=0 // pred_check_branch
    %8 = sbr.rel (0) target = $region5
  $region4: #{sparse_kernel_ft1d.1} parent=0 // pred_region
    _
  $region5: #{sparse_kernel_ft1d.1} parent=0 // pred_fallthru
    _
  // Predicated region
  $region6: #{sparse_kernel_ft1d.1} parent=0 // pred_check
    _
  $region7: #{sparse_kernel_ft1d.1} parent=0 // pred_check_branch
    %10 = sbr.rel (0) target = $region9
  $region8: #{sparse_kernel_ft1d.1} parent=0 // pred_region
    _
  $region9: #{sparse_kernel_ft1d.1} parent=0 // pred_fallthru
    _
  %v11 = vld [vmem:[%s0] sm:$0xff]
  %v12 = vld [vmem:[%s0 + $0x8] sm:$0x1]
  %v13 = vld [vmem:[%s0 + $0x10] sm:$0xff]
  %v14 = vld [vmem:[%s0 + $0x18] sm:$0x1]
  %v15 = vld [vmem:[%s1] sm:$0xff]
  %v16 = vld [vmem:[%s1 + $0x8] sm:$0xff]
  %v17 = vld [vmem:[%s1 + $0x10] sm:$0xff]
  %v18 = vld [vmem:[%s1 + $0x18] sm:$0xff]
  %v19 = vld [vmem:[%s1 + $0x20] sm:$0xff]
  %v20 = vld [vmem:[%s1 + $0x28] sm:$0xff]
  %v21 = vld [vmem:[%s1 + $0x30] sm:$0xff]
  %v22 = vld [vmem:[%s1 + $0x38] sm:$0xff]
  %v25 = vrot.slane %v13, 7
  %vm26 = vcmask 1041409
  %v27 = vsel %vm26, %v25, %v11
  %vm28 = vcmask 523264
  %v29 = vsel %vm28, %v27, 0
  %31 = vmatprep.subr.mxu0 0.0
  %32 = vmatpush1.msra.mxu0 %v15
  %33 = vmatprep.subr.mxu0 0.0
  %34 = vmatpush1.msra.mxu0 %v16
  %35 = vmatprep.subr.mxu0 0.0
  %36 = vmatpush1.msra.mxu0 %v17
  %37 = vmatprep.subr.mxu0 0.0
  %38 = vmatpush1.msra.mxu0 %v18
  %39 = vmatprep.subr.mxu0 0.0
  %40 = vmatpush1.msra.mxu0 %v19
  %41 = vmatprep.subr.mxu0 0.0
  %42 = vmatpush1.msra.mxu0 %v20
  %43 = vmatprep.subr.mxu0 0.0
  %44 = vmatpush1.msra.mxu0 %v21
  %45 = vmatprep.subr.mxu0 0.0
  %46 = vmatpush1.msra.mxu0 %v22
  %47 = vmatprep.subr.mxu0 0.0
  %48 = vmatpush1.msra.mxu0 0.0
  %49 = vmatprep.subr.mxu0 0.0
  %50 = vmatpush1.msra.mxu0 0.0
  %51 = vmatprep.subr.mxu0 0.0
  %52 = vmatpush1.msra.mxu0 0.0
  %53 = vmatprep.subr.mxu0 0.0
  %54 = vmatpush1.msra.mxu0 0.0
  %55 = vmatprep.subr.mxu0 0.0
  %56 = vmatpush1.msra.mxu0 0.0
  %57 = vmatprep.subr.mxu0 0.0
  %58 = vmatpush1.msra.mxu0 0.0
  %59 = vmatprep.subr.mxu0 0.0
  %60 = vmatpush1.msra.mxu0 0.0
  %61 = vmatprep.subr.mxu0 0.0
  %62 = vmatpush1.msra.mxu0 0.0
  %63 = vmatprep.subr.mxu0 0.0
  %64 = vmatpush1.msra.mxu0 0.0
  %65 = vmatprep.subr.mxu0 0.0
  %66 = vmatpush1.msra.mxu0 0.0
  %67 = vmatprep.subr.mxu0 0.0
  %68 = vmatpush1.msra.mxu0 0.0
  %69 = vmatprep.subr.mxu0 0.0
  %70 = vmatpush1.msra.mxu0 0.0
  %71 = vmatprep.subr.mxu0 0.0
  %72 = vmatpush1.msra.mxu0 0.0
  %73 = vmatprep.subr.mxu0 0.0
  %74 = vmatpush1.msra.mxu0 0.0
  %75 = vmatprep.subr.mxu0 0.0
  %76 = vmatpush1.msra.mxu0 0.0
  %77 = vmatprep.subr.mxu0 0.0
  %78 = vmatpush1.msra.mxu0 0.0
  %79 = vmatprep.subr.mxu0 0.0
  %80 = vmatpush1.msra.mxu0 0.0
  %81 = vmatprep.subr.mxu0 0.0
  %82 = vmatpush1.msra.mxu0 0.0
  %83 = vmatprep.subr.mxu0 0.0
  %84 = vmatpush1.msra.mxu0 0.0
  %85 = vmatprep.subr.mxu0 0.0
  %86 = vmatpush1.msra.mxu0 0.0
  %87 = vmatprep.subr.mxu0 0.0
  %88 = vmatpush1.msra.mxu0 0.0
  %89 = vmatprep.subr.mxu0 0.0
  %90 = vmatpush1.msra.mxu0 0.0
  %91 = vmatprep.subr.mxu0 0.0
  %92 = vmatpush1.msra.mxu0 0.0
  %93 = vmatprep.subr.mxu0 0.0
  %94 = vmatpush1.msra.mxu0 0.0
  %95 = vmatprep.mubr.f32.mxu0 0.0
  %96 = vmatmul.mubr.f32.gmra.mrb[0].mxu0 %v29
  %v97 = vpop.f32.mrb[0].mxu0
  %v98 = vadd.f32 0.0, %v97
  %v99 = vpop.f32.mrb[0].mxu0
  %100 = vdwg.mxu0
  %s101 = scalar_lea.vmem %s1, 64
  %v102 = vld [vmem:[%s101] sm:$0xff]
  %v103 = vld [vmem:[%s101 + $0x8] sm:$0xff]
  %v104 = vld [vmem:[%s101 + $0x10] sm:$0xff]
  %v105 = vld [vmem:[%s101 + $0x18] sm:$0xff]
  %v106 = vld [vmem:[%s101 + $0x20] sm:$0xff]
  %v107 = vld [vmem:[%s101 + $0x28] sm:$0xff]
  %v108 = vld [vmem:[%s101 + $0x30] sm:$0xff]
  %v109 = vld [vmem:[%s101 + $0x38] sm:$0xff]
  %v110 = vrot.slane %v11, 1
  %v111 = vsel %vm26, %v13, %v110
  %v112 = vsel %vm28, %v111, 0
  %114 = vmatprep.subr.mxu0 0.0
  %115 = vmatpush1.msra.mxu0 %v102
  %116 = vmatprep.subr.mxu0 0.0
  %117 = vmatpush1.msra.mxu0 %v103
  %118 = vmatprep.subr.mxu0 0.0
  %119 = vmatpush1.msra.mxu0 %v104
  %120 = vmatprep.subr.mxu0 0.0
  %121 = vmatpush1.msra.mxu0 %v105
  %122 = vmatprep.subr.mxu0 0.0
  %123 = vmatpush1.msra.mxu0 %v106
  %124 = vmatprep.subr.mxu0 0.0
  %125 = vmatpush1.msra.mxu0 %v107
  %126 = vmatprep.subr.mxu0 0.0
  %127 = vmatpush1.msra.mxu0 %v108
  %128 = vmatprep.subr.mxu0 0.0
  %129 = vmatpush1.msra.mxu0 %v109
  %130 = vmatprep.subr.mxu0 0.0
  %131 = vmatpush1.msra.mxu0 0.0
  %132 = vmatprep.subr.mxu0 0.0
  %133 = vmatpush1.msra.mxu0 0.0
  %134 = vmatprep.subr.mxu0 0.0
  %135 = vmatpush1.msra.mxu0 0.0
  %136 = vmatprep.subr.mxu0 0.0
  %137 = vmatpush1.msra.mxu0 0.0
  %138 = vmatprep.subr.mxu0 0.0
  %139 = vmatpush1.msra.mxu0 0.0
  %140 = vmatprep.subr.mxu0 0.0
  %141 = vmatpush1.msra.mxu0 0.0
  %142 = vmatprep.subr.mxu0 0.0
  %143 = vmatpush1.msra.mxu0 0.0
  %144 = vmatprep.subr.mxu0 0.0
  %145 = vmatpush1.msra.mxu0 0.0
  %146 = vmatprep.subr.mxu0 0.0
  %147 = vmatpush1.msra.mxu0 0.0
  %148 = vmatprep.subr.mxu0 0.0
  %149 = vmatpush1.msra.mxu0 0.0
  %150 = vmatprep.subr.mxu0 0.0
  %151 = vmatpush1.msra.mxu0 0.0
  %152 = vmatprep.subr.mxu0 0.0
  %153 = vmatpush1.msra.mxu0 0.0
  %154 = vmatprep.subr.mxu0 0.0
  %155 = vmatpush1.msra.mxu0 0.0
  %156 = vmatprep.subr.mxu0 0.0
  %157 = vmatpush1.msra.mxu0 0.0
  %158 = vmatprep.subr.mxu0 0.0
  %159 = vmatpush1.msra.mxu0 0.0
  %160 = vmatprep.subr.mxu0 0.0
  %161 = vmatpush1.msra.mxu0 0.0
  %162 = vmatprep.subr.mxu0 0.0
  %163 = vmatpush1.msra.mxu0 0.0
  %164 = vmatprep.subr.mxu0 0.0
  %165 = vmatpush1.msra.mxu0 0.0
  %166 = vmatprep.subr.mxu0 0.0
  %167 = vmatpush1.msra.mxu0 0.0
  %168 = vmatprep.subr.mxu0 0.0
  %169 = vmatpush1.msra.mxu0 0.0
  %170 = vmatprep.subr.mxu0 0.0
  %171 = vmatpush1.msra.mxu0 0.0
  %172 = vmatprep.subr.mxu0 0.0
  %173 = vmatpush1.msra.mxu0 0.0
  %174 = vmatprep.subr.mxu0 0.0
  %175 = vmatpush1.msra.mxu0 0.0
  %176 = vmatprep.subr.mxu0 0.0
  %177 = vmatpush1.msra.mxu0 0.0
  %178 = vmatprep.mubr.f32.mxu0 0.0
  %179 = vmatmul.mubr.f32.gmra.mrb[0].mxu0 %v112
  %v180 = vpop.f32.mrb[0].mxu0
  %v181 = vadd.f32 0.0, %v180
  %v182 = vpop.f32.mrb[0].mxu0
  %183 = vdwg.mxu0
  %s184 = scalar_lea.vmem %s1, 128
  %v185 = vld [vmem:[%s184] sm:$0xff]
  %v186 = vld [vmem:[%s184 + $0x8] sm:$0xff]
  %v187 = vld [vmem:[%s184 + $0x10] sm:$0xff]
  %v188 = vld [vmem:[%s184 + $0x18] sm:$0xff]
  %v189 = vld [vmem:[%s184 + $0x20] sm:$0xff]
  %v190 = vld [vmem:[%s184 + $0x28] sm:$0xff]
  %v191 = vld [vmem:[%s184 + $0x30] sm:$0xff]
  %v192 = vld [vmem:[%s184 + $0x38] sm:$0xff]
  %v193 = vrot.slane %v11, 2
  %v194 = vrot.slane %v13, 1
  %v195 = vsel %vm26, %v194, %v193
  %v196 = vsel %vm28, %v195, 0
  %198 = vmatprep.subr.mxu0 0.0
  %199 = vmatpush1.msra.mxu0 %v185
  %200 = vmatprep.subr.mxu0 0.0
  %201 = vmatpush1.msra.mxu0 %v186
  %202 = vmatprep.subr.mxu0 0.0
  %203 = vmatpush1.msra.mxu0 %v187
  %204 = vmatprep.subr.mxu0 0.0
  %205 = vmatpush1.msra.mxu0 %v188
  %206 = vmatprep.subr.mxu0 0.0
  %207 = vmatpush1.msra.mxu0 %v189
  %208 = vmatprep.subr.mxu0 0.0
  %209 = vmatpush1.msra.mxu0 %v190
  %210 = vmatprep.subr.mxu0 0.0
  %211 = vmatpush1.msra.mxu0 %v191
  %212 = vmatprep.subr.mxu0 0.0
  %213 = vmatpush1.msra.mxu0 %v192
  %214 = vmatprep.subr.mxu0 0.0
  %215 = vmatpush1.msra.mxu0 0.0
  %216 = vmatprep.subr.mxu0 0.0
  %217 = vmatpush1.msra.mxu0 0.0
  %218 = vmatprep.subr.mxu0 0.0
  %219 = vmatpush1.msra.mxu0 0.0
  %220 = vmatprep.subr.mxu0 0.0
  %221 = vmatpush1.msra.mxu0 0.0
  %222 = vmatprep.subr.mxu0 0.0
  %223 = vmatpush1.msra.mxu0 0.0
  %224 = vmatprep.subr.mxu0 0.0
  %225 = vmatpush1.msra.mxu0 0.0
  %226 = vmatprep.subr.mxu0 0.0
  %227 = vmatpush1.msra.mxu0 0.0
  %228 = vmatprep.subr.mxu0 0.0
  %229 = vmatpush1.msra.mxu0 0.0
  %230 = vmatprep.subr.mxu0 0.0
  %231 = vmatpush1.msra.mxu0 0.0
  %232 = vmatprep.subr.mxu0 0.0
  %233 = vmatpush1.msra.mxu0 0.0
  %234 = vmatprep.subr.mxu0 0.0
  %235 = vmatpush1.msra.mxu0 0.0
  %236 = vmatprep.subr.mxu0 0.0
  %237 = vmatpush1.msra.mxu0 0.0
  %238 = vmatprep.subr.mxu0 0.0
  %239 = vmatpush1.msra.mxu0 0.0
  %240 = vmatprep.subr.mxu0 0.0
  %241 = vmatpush1.msra.mxu0 0.0
  %242 = vmatprep.subr.mxu0 0.0
  %243 = vmatpush1.msra.mxu0 0.0
  %244 = vmatprep.subr.mxu0 0.0
  %245 = vmatpush1.msra.mxu0 0.0
  %246 = vmatprep.subr.mxu0 0.0
  %247 = vmatpush1.msra.mxu0 0.0
  %248 = vmatprep.subr.mxu0 0.0
  %249 = vmatpush1.msra.mxu0 0.0
  %250 = vmatprep.subr.mxu0 0.0
  %251 = vmatpush1.msra.mxu0 0.0
  %252 = vmatprep.subr.mxu0 0.0
  %253 = vmatpush1.msra.mxu0 0.0
  %254 = vmatprep.subr.mxu0 0.0
  %255 = vmatpush1.msra.mxu0 0.0
  %256 = vmatprep.subr.mxu0 0.0
  %257 = vmatpush1.msra.mxu0 0.0
  %258 = vmatprep.subr.mxu0 0.0
  %259 = vmatpush1.msra.mxu0 0.0
  %260 = vmatprep.subr.mxu0 0.0
  %261 = vmatpush1.msra.mxu0 0.0
  %262 = vmatprep.mubr.f32.mxu0 0.0
  %263 = vmatmul.mubr.f32.gmra.mrb[0].mxu0 %v196
  %v264 = vpop.f32.mrb[0].mxu0
  %v265 = vadd.f32 0.0, %v264
  %v266 = vpop.f32.mrb[0].mxu0
  %267 = vdwg.mxu0
  %s268 = scalar_lea.vmem %s1, 192
  %v269 = vld [vmem:[%s268] sm:$0xff]
  %v270 = vld [vmem:[%s268 + $0x8] sm:$0xff]
  %v271 = vld [vmem:[%s268 + $0x10] sm:$0xff]
  %v272 = vld [vmem:[%s268 + $0x18] sm:$0xff]
  %v273 = vld [vmem:[%s268 + $0x20] sm:$0xff]
  %v274 = vld [vmem:[%s268 + $0x28] sm:$0xff]
  %v275 = vld [vmem:[%s268 + $0x30] sm:$0xff]
  %v276 = vld [vmem:[%s268 + $0x38] sm:$0xff]
  %v277 = vrot.slane %v11, 3
  %v278 = vrot.slane %v13, 2
  %v279 = vsel %vm26, %v278, %v277
  %v280 = vsel %vm28, %v279, 0
  %282 = vmatprep.subr.mxu0 0.0
  %283 = vmatpush1.msra.mxu0 %v269
  %284 = vmatprep.subr.mxu0 0.0
  %285 = vmatpush1.msra.mxu0 %v270
  %286 = vmatprep.subr.mxu0 0.0
  %287 = vmatpush1.msra.mxu0 %v271
  %288 = vmatprep.subr.mxu0 0.0
  %289 = vmatpush1.msra.mxu0 %v272
  %290 = vmatprep.subr.mxu0 0.0
  %291 = vmatpush1.msra.mxu0 %v273
  %292 = vmatprep.subr.mxu0 0.0
  %293 = vmatpush1.msra.mxu0 %v274
  %294 = vmatprep.subr.mxu0 0.0
  %295 = vmatpush1.msra.mxu0 %v275
  %296 = vmatprep.subr.mxu0 0.0
  %297 = vmatpush1.msra.mxu0 %v276
  %298 = vmatprep.subr.mxu0 0.0
  %299 = vmatpush1.msra.mxu0 0.0
  %300 = vmatprep.subr.mxu0 0.0
  %301 = vmatpush1.msra.mxu0 0.0
  %302 = vmatprep.subr.mxu0 0.0
  %303 = vmatpush1.msra.mxu0 0.0
  %304 = vmatprep.subr.mxu0 0.0
  %305 = vmatpush1.msra.mxu0 0.0
  %306 = vmatprep.subr.mxu0 0.0
  %307 = vmatpush1.msra.mxu0 0.0
  %308 = vmatprep.subr.mxu0 0.0
  %309 = vmatpush1.msra.mxu0 0.0
  %310 = vmatprep.subr.mxu0 0.0
  %311 = vmatpush1.msra.mxu0 0.0
  %312 = vmatprep.subr.mxu0 0.0
  %313 = vmatpush1.msra.mxu0 0.0
  %314 = vmatprep.subr.mxu0 0.0
  %315 = vmatpush1.msra.mxu0 0.0
  %316 = vmatprep.subr.mxu0 0.0
  %317 = vmatpush1.msra.mxu0 0.0
  %318 = vmatprep.subr.mxu0 0.0
  %319 = vmatpush1.msra.mxu0 0.0
  %320 = vmatprep.subr.mxu0 0.0
  %321 = vmatpush1.msra.mxu0 0.0
  %322 = vmatprep.subr.mxu0 0.0
  %323 = vmatpush1.msra.mxu0 0.0
  %324 = vmatprep.subr.mxu0 0.0
  %325 = vmatpush1.msra.mxu0 0.0
  %326 = vmatprep.subr.mxu0 0.0
  %327 = vmatpush1.msra.mxu0 0.0
  %328 = vmatprep.subr.mxu0 0.0
  %329 = vmatpush1.msra.mxu0 0.0
  %330 = vmatprep.subr.mxu0 0.0
  %331 = vmatpush1.msra.mxu0 0.0
  %332 = vmatprep.subr.mxu0 0.0
  %333 = vmatpush1.msra.mxu0 0.0
  %334 = vmatprep.subr.mxu0 0.0
  %335 = vmatpush1.msra.mxu0 0.0
  %336 = vmatprep.subr.mxu0 0.0
  %337 = vmatpush1.msra.mxu0 0.0
  %338 = vmatprep.subr.mxu0 0.0
  %339 = vmatpush1.msra.mxu0 0.0
  %340 = vmatprep.subr.mxu0 0.0
  %341 = vmatpush1.msra.mxu0 0.0
  %342 = vmatprep.subr.mxu0 0.0
  %343 = vmatpush1.msra.mxu0 0.0
  %344 = vmatprep.subr.mxu0 0.0
  %345 = vmatpush1.msra.mxu0 0.0
  %346 = vmatprep.mubr.f32.mxu0 0.0
  %347 = vmatmul.mubr.f32.gmra.mrb[0].mxu0 %v280
  %v348 = vpop.f32.mrb[0].mxu0
  %v349 = vadd.f32 0.0, %v348
  %v350 = vpop.f32.mrb[0].mxu0
  %351 = vdwg.mxu0
  %s352 = scalar_lea.vmem %s1, 256
  %v353 = vld [vmem:[%s352] sm:$0xff]
  %v354 = vld [vmem:[%s352 + $0x8] sm:$0xff]
  %v355 = vld [vmem:[%s352 + $0x10] sm:$0xff]
  %v356 = vld [vmem:[%s352 + $0x18] sm:$0xff]
  %v357 = vld [vmem:[%s352 + $0x20] sm:$0xff]
  %v358 = vld [vmem:[%s352 + $0x28] sm:$0xff]
  %v359 = vld [vmem:[%s352 + $0x30] sm:$0xff]
  %v360 = vld [vmem:[%s352 + $0x38] sm:$0xff]
  %v361 = vrot.slane %v11, 4
  %v362 = vrot.slane %v13, 3
  %v363 = vsel %vm26, %v362, %v361
  %v364 = vsel %vm28, %v363, 0
  %366 = vmatprep.subr.mxu0 0.0
  %367 = vmatpush1.msra.mxu0 %v353
  %368 = vmatprep.subr.mxu0 0.0
  %369 = vmatpush1.msra.mxu0 %v354
  %370 = vmatprep.subr.mxu0 0.0
  %371 = vmatpush1.msra.mxu0 %v355
  %372 = vmatprep.subr.mxu0 0.0
  %373 = vmatpush1.msra.mxu0 %v356
  %374 = vmatprep.subr.mxu0 0.0
  %375 = vmatpush1.msra.mxu0 %v357
  %376 = vmatprep.subr.mxu0 0.0
  %377 = vmatpush1.msra.mxu0 %v358
  %378 = vmatprep.subr.mxu0 0.0
  %379 = vmatpush1.msra.mxu0 %v359
  %380 = vmatprep.subr.mxu0 0.0
  %381 = vmatpush1.msra.mxu0 %v360
  %382 = vmatprep.subr.mxu0 0.0
  %383 = vmatpush1.msra.mxu0 0.0
  %384 = vmatprep.subr.mxu0 0.0
  %385 = vmatpush1.msra.mxu0 0.0
  %386 = vmatprep.subr.mxu0 0.0
  %387 = vmatpush1.msra.mxu0 0.0
  %388 = vmatprep.subr.mxu0 0.0
  %389 = vmatpush1.msra.mxu0 0.0
  %390 = vmatprep.subr.mxu0 0.0
  %391 = vmatpush1.msra.mxu0 0.0
  %392 = vmatprep.subr.mxu0 0.0
  %393 = vmatpush1.msra.mxu0 0.0
  %394 = vmatprep.subr.mxu0 0.0
  %395 = vmatpush1.msra.mxu0 0.0
  %396 = vmatprep.subr.mxu0 0.0
  %397 = vmatpush1.msra.mxu0 0.0
  %398 = vmatprep.subr.mxu0 0.0
  %399 = vmatpush1.msra.mxu0 0.0
  %400 = vmatprep.subr.mxu0 0.0
  %401 = vmatpush1.msra.mxu0 0.0
  %402 = vmatprep.subr.mxu0 0.0
  %403 = vmatpush1.msra.mxu0 0.0
  %404 = vmatprep.subr.mxu0 0.0
  %405 = vmatpush1.msra.mxu0 0.0
  %406 = vmatprep.subr.mxu0 0.0
  %407 = vmatpush1.msra.mxu0 0.0
  %408 = vmatprep.subr.mxu0 0.0
  %409 = vmatpush1.msra.mxu0 0.0
  %410 = vmatprep.subr.mxu0 0.0
  %411 = vmatpush1.msra.mxu0 0.0
  %412 = vmatprep.subr.mxu0 0.0
  %413 = vmatpush1.msra.mxu0 0.0
  %414 = vmatprep.subr.mxu0 0.0
  %415 = vmatpush1.msra.mxu0 0.0
  %416 = vmatprep.subr.mxu0 0.0
  %417 = vmatpush1.msra.mxu0 0.0
  %418 = vmatprep.subr.mxu0 0.0
  %419 = vmatpush1.msra.mxu0 0.0
  %420 = vmatprep.subr.mxu0 0.0
  %421 = vmatpush1.msra.mxu0 0.0
  %422 = vmatprep.subr.mxu0 0.0
  %423 = vmatpush1.msra.mxu0 0.0
  %424 = vmatprep.subr.mxu0 0.0
  %425 = vmatpush1.msra.mxu0 0.0
  %426 = vmatprep.subr.mxu0 0.0
  %427 = vmatpush1.msra.mxu0 0.0
  %428 = vmatprep.subr.mxu0 0.0
  %429 = vmatpush1.msra.mxu0 0.0
  %430 = vmatprep.mubr.f32.mxu0 0.0
  %431 = vmatmul.mubr.f32.gmra.mrb[0].mxu0 %v364
  %v432 = vpop.f32.mrb[0].mxu0
  %v433 = vadd.f32 0.0, %v432
  %v434 = vpop.f32.mrb[0].mxu0
  %435 = vdwg.mxu0
  %s436 = scalar_lea.vmem %s1, 320
  %v437 = vld [vmem:[%s436] sm:$0xff]
  %v438 = vld [vmem:[%s436 + $0x8] sm:$0xff]
  %v439 = vld [vmem:[%s436 + $0x10] sm:$0xff]
  %v440 = vld [vmem:[%s436 + $0x18] sm:$0xff]
  %v441 = vld [vmem:[%s436 + $0x20] sm:$0xff]
  %v442 = vld [vmem:[%s436 + $0x28] sm:$0xff]
  %v443 = vld [vmem:[%s436 + $0x30] sm:$0xff]
  %v444 = vld [vmem:[%s436 + $0x38] sm:$0xff]
  %v445 = vrot.slane %v11, 5
  %v446 = vrot.slane %v13, 4
  %v447 = vsel %vm26, %v446, %v445
  %v448 = vsel %vm28, %v447, 0
  %450 = vmatprep.subr.mxu0 0.0
  %451 = vmatpush1.msra.mxu0 %v437
  %452 = vmatprep.subr.mxu0 0.0
  %453 = vmatpush1.msra.mxu0 %v438
  %454 = vmatprep.subr.mxu0 0.0
  %455 = vmatpush1.msra.mxu0 %v439
  %456 = vmatprep.subr.mxu0 0.0
  %457 = vmatpush1.msra.mxu0 %v440
  %458 = vmatprep.subr.mxu0 0.0
  %459 = vmatpush1.msra.mxu0 %v441
  %460 = vmatprep.subr.mxu0 0.0
  %461 = vmatpush1.msra.mxu0 %v442
  %462 = vmatprep.subr.mxu0 0.0
  %463 = vmatpush1.msra.mxu0 %v443
  %464 = vmatprep.subr.mxu0 0.0
  %465 = vmatpush1.msra.mxu0 %v444
  %466 = vmatprep.subr.mxu0 0.0
  %467 = vmatpush1.msra.mxu0 0.0
  %468 = vmatprep.subr.mxu0 0.0
  %469 = vmatpush1.msra.mxu0 0.0
  %470 = vmatprep.subr.mxu0 0.0
  %471 = vmatpush1.msra.mxu0 0.0
  %472 = vmatprep.subr.mxu0 0.0
  %473 = vmatpush1.msra.mxu0 0.0
  %474 = vmatprep.subr.mxu0 0.0
  %475 = vmatpush1.msra.mxu0 0.0
  %476 = vmatprep.subr.mxu0 0.0
  %477 = vmatpush1.msra.mxu0 0.0
  %478 = vmatprep.subr.mxu0 0.0
  %479 = vmatpush1.msra.mxu0 0.0
  %480 = vmatprep.subr.mxu0 0.0
  %481 = vmatpush1.msra.mxu0 0.0
  %482 = vmatprep.subr.mxu0 0.0
  %483 = vmatpush1.msra.mxu0 0.0
  %484 = vmatprep.subr.mxu0 0.0
  %485 = vmatpush1.msra.mxu0 0.0
  %486 = vmatprep.subr.mxu0 0.0
  %487 = vmatpush1.msra.mxu0 0.0
  %488 = vmatprep.subr.mxu0 0.0
  %489 = vmatpush1.msra.mxu0 0.0
  %490 = vmatprep.subr.mxu0 0.0
  %491 = vmatpush1.msra.mxu0 0.0
  %492 = vmatprep.subr.mxu0 0.0
  %493 = vmatpush1.msra.mxu0 0.0
  %494 = vmatprep.subr.mxu0 0.0
  %495 = vmatpush1.msra.mxu0 0.0
  %496 = vmatprep.subr.mxu0 0.0
  %497 = vmatpush1.msra.mxu0 0.0
  %498 = vmatprep.subr.mxu0 0.0
  %499 = vmatpush1.msra.mxu0 0.0
  %500 = vmatprep.subr.mxu0 0.0
  %501 = vmatpush1.msra.mxu0 0.0
  %502 = vmatprep.subr.mxu0 0.0
  %503 = vmatpush1.msra.mxu0 0.0
  %504 = vmatprep.subr.mxu0 0.0
  %505 = vmatpush1.msra.mxu0 0.0
  %506 = vmatprep.subr.mxu0 0.0
  %507 = vmatpush1.msra.mxu0 0.0
  %508 = vmatprep.subr.mxu0 0.0
  %509 = vmatpush1.msra.mxu0 0.0
  %510 = vmatprep.subr.mxu0 0.0
  %511 = vmatpush1.msra.mxu0 0.0
  %512 = vmatprep.subr.mxu0 0.0
  %513 = vmatpush1.msra.mxu0 0.0
  %514 = vmatprep.mubr.f32.mxu0 0.0
  %515 = vmatmul.mubr.f32.gmra.mrb[0].mxu0 %v448
  %v516 = vpop.f32.mrb[0].mxu0
  %v517 = vadd.f32 0.0, %v516
  %v518 = vpop.f32.mrb[0].mxu0
  %519 = vdwg.mxu0
  %s520 = scalar_lea.vmem %s1, 384
  %v521 = vld [vmem:[%s520] sm:$0xff]
  %v522 = vld [vmem:[%s520 + $0x8] sm:$0xff]
  %v523 = vld [vmem:[%s520 + $0x10] sm:$0xff]
  %v524 = vld [vmem:[%s520 + $0x18] sm:$0xff]
  %v525 = vld [vmem:[%s520 + $0x20] sm:$0xff]
  %v526 = vld [vmem:[%s520 + $0x28] sm:$0xff]
  %v527 = vld [vmem:[%s520 + $0x30] sm:$0xff]
  %v528 = vld [vmem:[%s520 + $0x38] sm:$0xff]
  %v529 = vrot.slane %v11, 6
  %v530 = vrot.slane %v13, 5
  %v531 = vsel %vm26, %v530, %v529
  %v532 = vsel %vm28, %v531, 0
  %534 = vmatprep.subr.mxu0 0.0
  %535 = vmatpush1.msra.mxu0 %v521
  %536 = vmatprep.subr.mxu0 0.0
  %537 = vmatpush1.msra.mxu0 %v522
  %538 = vmatprep.subr.mxu0 0.0
  %539 = vmatpush1.msra.mxu0 %v523
  %540 = vmatprep.subr.mxu0 0.0
  %541 = vmatpush1.msra.mxu0 %v524
  %542 = vmatprep.subr.mxu0 0.0
  %543 = vmatpush1.msra.mxu0 %v525
  %544 = vmatprep.subr.mxu0 0.0
  %545 = vmatpush1.msra.mxu0 %v526
  %546 = vmatprep.subr.mxu0 0.0
  %547 = vmatpush1.msra.mxu0 %v527
  %548 = vmatprep.subr.mxu0 0.0
  %549 = vmatpush1.msra.mxu0 %v528
  %550 = vmatprep.subr.mxu0 0.0
  %551 = vmatpush1.msra.mxu0 0.0
  %552 = vmatprep.subr.mxu0 0.0
  %553 = vmatpush1.msra.mxu0 0.0
  %554 = vmatprep.subr.mxu0 0.0
  %555 = vmatpush1.msra.mxu0 0.0
  %556 = vmatprep.subr.mxu0 0.0
  %557 = vmatpush1.msra.mxu0 0.0
  %558 = vmatprep.subr.mxu0 0.0
  %559 = vmatpush1.msra.mxu0 0.0
  %560 = vmatprep.subr.mxu0 0.0
  %561 = vmatpush1.msra.mxu0 0.0
  %562 = vmatprep.subr.mxu0 0.0
  %563 = vmatpush1.msra.mxu0 0.0
  %564 = vmatprep.subr.mxu0 0.0
  %565 = vmatpush1.msra.mxu0 0.0
  %566 = vmatprep.subr.mxu0 0.0
  %567 = vmatpush1.msra.mxu0 0.0
  %568 = vmatprep.subr.mxu0 0.0
  %569 = vmatpush1.msra.mxu0 0.0
  %570 = vmatprep.subr.mxu0 0.0
  %571 = vmatpush1.msra.mxu0 0.0
  %572 = vmatprep.subr.mxu0 0.0
  %573 = vmatpush1.msra.mxu0 0.0
  %574 = vmatprep.subr.mxu0 0.0
  %575 = vmatpush1.msra.mxu0 0.0
  %576 = vmatprep.subr.mxu0 0.0
  %577 = vmatpush1.msra.mxu0 0.0
  %578 = vmatprep.subr.mxu0 0.0
  %579 = vmatpush1.msra.mxu0 0.0
  %580 = vmatprep.subr.mxu0 0.0
  %581 = vmatpush1.msra.mxu0 0.0
  %582 = vmatprep.subr.mxu0 0.0
  %583 = vmatpush1.msra.mxu0 0.0
  %584 = vmatprep.subr.mxu0 0.0
  %585 = vmatpush1.msra.mxu0 0.0
  %586 = vmatprep.subr.mxu0 0.0
  %587 = vmatpush1.msra.mxu0 0.0
  %588 = vmatprep.subr.mxu0 0.0
  %589 = vmatpush1.msra.mxu0 0.0
  %590 = vmatprep.subr.mxu0 0.0
  %591 = vmatpush1.msra.mxu0 0.0
  %592 = vmatprep.subr.mxu0 0.0
  %593 = vmatpush1.msra.mxu0 0.0
  %594 = vmatprep.subr.mxu0 0.0
  %595 = vmatpush1.msra.mxu0 0.0
  %596 = vmatprep.subr.mxu0 0.0
  %597 = vmatpush1.msra.mxu0 0.0
  %598 = vmatprep.mubr.f32.mxu0 0.0
  %599 = vmatmul.mubr.f32.gmra.mrb[0].mxu0 %v532
  %v600 = vpop.f32.mrb[0].mxu0
  %v601 = vadd.f32 0.0, %v600
  %v602 = vpop.f32.mrb[0].mxu0
  %603 = vdwg.mxu0
  %s604 = scalar_lea.vmem %s1, 448
  %v605 = vld [vmem:[%s604] sm:$0xff]
  %v606 = vld [vmem:[%s604 + $0x8] sm:$0xff]
  %v607 = vld [vmem:[%s604 + $0x10] sm:$0xff]
  %v608 = vld [vmem:[%s604 + $0x18] sm:$0xff]
  %v609 = vld [vmem:[%s604 + $0x20] sm:$0xff]
  %v610 = vld [vmem:[%s604 + $0x28] sm:$0xff]
  %v611 = vld [vmem:[%s604 + $0x30] sm:$0xff]
  %v612 = vld [vmem:[%s604 + $0x38] sm:$0xff]
  %v613 = vrot.slane %v11, 7
  %v614 = vrot.slane %v13, 6
  %v615 = vsel %vm26, %v614, %v613
  %v616 = vsel %vm28, %v615, 0
  %618 = vmatprep.subr.mxu0 0.0
  %619 = vmatpush1.msra.mxu0 %v605
  %620 = vmatprep.subr.mxu0 0.0
  %621 = vmatpush1.msra.mxu0 %v606
  %622 = vmatprep.subr.mxu0 0.0
  %623 = vmatpush1.msra.mxu0 %v607
  %624 = vmatprep.subr.mxu0 0.0
  %625 = vmatpush1.msra.mxu0 %v608
  %626 = vmatprep.subr.mxu0 0.0
  %627 = vmatpush1.msra.mxu0 %v609
  %628 = vmatprep.subr.mxu0 0.0
  %629 = vmatpush1.msra.mxu0 %v610
  %630 = vmatprep.subr.mxu0 0.0
  %631 = vmatpush1.msra.mxu0 %v611
  %632 = vmatprep.subr.mxu0 0.0
  %633 = vmatpush1.msra.mxu0 %v612
  %634 = vmatprep.subr.mxu0 0.0
  %635 = vmatpush1.msra.mxu0 0.0
  %636 = vmatprep.subr.mxu0 0.0
  %637 = vmatpush1.msra.mxu0 0.0
  %638 = vmatprep.subr.mxu0 0.0
  %639 = vmatpush1.msra.mxu0 0.0
  %640 = vmatprep.subr.mxu0 0.0
  %641 = vmatpush1.msra.mxu0 0.0
  %642 = vmatprep.subr.mxu0 0.0
  %643 = vmatpush1.msra.mxu0 0.0
  %644 = vmatprep.subr.mxu0 0.0
  %645 = vmatpush1.msra.mxu0 0.0
  %646 = vmatprep.subr.mxu0 0.0
  %647 = vmatpush1.msra.mxu0 0.0
  %648 = vmatprep.subr.mxu0 0.0
  %649 = vmatpush1.msra.mxu0 0.0
  %650 = vmatprep.subr.mxu0 0.0
  %651 = vmatpush1.msra.mxu0 0.0
  %652 = vmatprep.subr.mxu0 0.0
  %653 = vmatpush1.msra.mxu0 0.0
  %654 = vmatprep.subr.mxu0 0.0
  %655 = vmatpush1.msra.mxu0 0.0
  %656 = vmatprep.subr.mxu0 0.0
  %657 = vmatpush1.msra.mxu0 0.0
  %658 = vmatprep.subr.mxu0 0.0
  %659 = vmatpush1.msra.mxu0 0.0
  %660 = vmatprep.subr.mxu0 0.0
  %661 = vmatpush1.msra.mxu0 0.0
  %662 = vmatprep.subr.mxu0 0.0
  %663 = vmatpush1.msra.mxu0 0.0
  %664 = vmatprep.subr.mxu0 0.0
  %665 = vmatpush1.msra.mxu0 0.0
  %666 = vmatprep.subr.mxu0 0.0
  %667 = vmatpush1.msra.mxu0 0.0
  %668 = vmatprep.subr.mxu0 0.0
  %669 = vmatpush1.msra.mxu0 0.0
  %670 = vmatprep.subr.mxu0 0.0
  %671 = vmatpush1.msra.mxu0 0.0
  %672 = vmatprep.subr.mxu0 0.0
  %673 = vmatpush1.msra.mxu0 0.0
  %674 = vmatprep.subr.mxu0 0.0
  %675 = vmatpush1.msra.mxu0 0.0
  %676 = vmatprep.subr.mxu0 0.0
  %677 = vmatpush1.msra.mxu0 0.0
  %678 = vmatprep.subr.mxu0 0.0
  %679 = vmatpush1.msra.mxu0 0.0
  %680 = vmatprep.subr.mxu0 0.0
  %681 = vmatpush1.msra.mxu0 0.0
  %682 = vmatprep.mubr.f32.mxu0 0.0
  %683 = vmatmul.mubr.f32.gmra.mrb[0].mxu0 %v616
  %v684 = vpop.f32.mrb[0].mxu0
  %v685 = vadd.f32 0.0, %v684
  %v686 = vpop.f32.mrb[0].mxu0
  %687 = vdwg.mxu0
  %s688 = scalar_lea.vmem %s1, 512
  %v689 = vld [vmem:[%s688] sm:$0xff]
  %v690 = vld [vmem:[%s688 + $0x8] sm:$0xff]
  %v691 = vld [vmem:[%s688 + $0x10] sm:$0xff]
  %v692 = vld [vmem:[%s688 + $0x18] sm:$0xff]
  %v693 = vld [vmem:[%s688 + $0x20] sm:$0xff]
  %v694 = vld [vmem:[%s688 + $0x28] sm:$0xff]
  %v695 = vld [vmem:[%s688 + $0x30] sm:$0xff]
  %v696 = vld [vmem:[%s688 + $0x38] sm:$0xff]
  %v699 = vrot.slane %v14, 7
  %v700 = vsel %vm26, %v699, %v12
  %v701 = vsel %vm28, %v700, 0
  %703 = vmatprep.subr.mxu0 0.0
  %704 = vmatpush1.msra.mxu0 %v689
  %705 = vmatprep.subr.mxu0 0.0
  %706 = vmatpush1.msra.mxu0 %v690
  %707 = vmatprep.subr.mxu0 0.0
  %708 = vmatpush1.msra.mxu0 %v691
  %709 = vmatprep.subr.mxu0 0.0
  %710 = vmatpush1.msra.mxu0 %v692
  %711 = vmatprep.subr.mxu0 0.0
  %712 = vmatpush1.msra.mxu0 %v693
  %713 = vmatprep.subr.mxu0 0.0
  %714 = vmatpush1.msra.mxu0 %v694
  %715 = vmatprep.subr.mxu0 0.0
  %716 = vmatpush1.msra.mxu0 %v695
  %717 = vmatprep.subr.mxu0 0.0
  %718 = vmatpush1.msra.mxu0 %v696
  %719 = vmatprep.subr.mxu0 0.0
  %720 = vmatpush1.msra.mxu0 0.0
  %721 = vmatprep.subr.mxu0 0.0
  %722 = vmatpush1.msra.mxu0 0.0
  %723 = vmatprep.subr.mxu0 0.0
  %724 = vmatpush1.msra.mxu0 0.0
  %725 = vmatprep.subr.mxu0 0.0
  %726 = vmatpush1.msra.mxu0 0.0
  %727 = vmatprep.subr.mxu0 0.0
  %728 = vmatpush1.msra.mxu0 0.0
  %729 = vmatprep.subr.mxu0 0.0
  %730 = vmatpush1.msra.mxu0 0.0
  %731 = vmatprep.subr.mxu0 0.0
  %732 = vmatpush1.msra.mxu0 0.0
  %733 = vmatprep.subr.mxu0 0.0
  %734 = vmatpush1.msra.mxu0 0.0
  %735 = vmatprep.subr.mxu0 0.0
  %736 = vmatpush1.msra.mxu0 0.0
  %737 = vmatprep.subr.mxu0 0.0
  %738 = vmatpush1.msra.mxu0 0.0
  %739 = vmatprep.subr.mxu0 0.0
  %740 = vmatpush1.msra.mxu0 0.0
  %741 = vmatprep.subr.mxu0 0.0
  %742 = vmatpush1.msra.mxu0 0.0
  %743 = vmatprep.subr.mxu0 0.0
  %744 = vmatpush1.msra.mxu0 0.0
  %745 = vmatprep.subr.mxu0 0.0
  %746 = vmatpush1.msra.mxu0 0.0
  %747 = vmatprep.subr.mxu0 0.0
  %748 = vmatpush1.msra.mxu0 0.0
  %749 = vmatprep.subr.mxu0 0.0
  %750 = vmatpush1.msra.mxu0 0.0
  %751 = vmatprep.subr.mxu0 0.0
  %752 = vmatpush1.msra.mxu0 0.0
  %753 = vmatprep.subr.mxu0 0.0
  %754 = vmatpush1.msra.mxu0 0.0
  %755 = vmatprep.subr.mxu0 0.0
  %756 = vmatpush1.msra.mxu0 0.0
  %757 = vmatprep.subr.mxu0 0.0
  %758 = vmatpush1.msra.mxu0 0.0
  %759 = vmatprep.subr.mxu0 0.0
  %760 = vmatpush1.msra.mxu0 0.0
  %761 = vmatprep.subr.mxu0 0.0
  %762 = vmatpush1.msra.mxu0 0.0
  %763 = vmatprep.subr.mxu0 0.0
  %764 = vmatpush1.msra.mxu0 0.0
  %765 = vmatprep.subr.mxu0 0.0
  %766 = vmatpush1.msra.mxu0 0.0
  %767 = vmatprep.mubr.f32.mxu0 0.0
  %768 = vmatmul.mubr.f32.gmra.mrb[0].mxu0 %v701
  %v769 = vpop.f32.mrb[0].mxu0
  %v770 = vadd.f32 0.0, %v769
  %v771 = vpop.f32.mrb[0].mxu0
  %772 = vdwg.mxu0
  %774 = vrot.lane.b32.xlu0 %v181, 64
  %v775 = vpop.permute.xlu0 %774
  %778 = vrot.lane.b32.xlu0 %v349, 64
  %v779 = vpop.permute.xlu0 %778
  %782 = vrot.lane.b32.xlu0 %v517, 64
  %v783 = vpop.permute.xlu0 %782
  %786 = vrot.lane.b32.xlu0 %v685, 64
  %v787 = vpop.permute.xlu0 %786
  %v789 = vsel %vm28, %v98, %v775
  %v790 = vsel %vm28, %v265, %v779
  %v791 = vsel %vm28, %v433, %v783
  %v792 = vsel %vm28, %v601, %v787
  %v798 = vcombine.low %v789, %v790
  %v799 = vcombine.low %v791, %v792
  %v801 = vunpack.c.l.s4 1983009808
  %v802 = vunpack.c.0.s8 %v801
  %v803 = vlaneseq
  %v804 = vshrl.u32 %v803, 7
  %v805 = vsub.s32 %v802, %v804
  %v806 = vrot.slane %v798, %v805
  %v808 = vunpack.c.l.s4 1983009808
  %v809 = vunpack.c.0.s8 %v808
  %v810 = vlaneseq
  %v811 = vshrl.u32 %v810, 7
  %v812 = vsub.s32 %v809, %v811
  %v813 = vrot.slane %v799, %v812
  %v814 = vcombine.low %v806, %v813
  %v816 = vunpack.c.l.s4 1983009808
  %v817 = vunpack.c.0.s8 %v816
  %v818 = vlaneseq
  %v819 = vshrl.u32 %v818, 7
  %v820 = vsub.s32 %v817, %v819
  %v821 = vrot.slane %v770, %v820
  %824 = vst [vmem:[%s2] sm:$0xff] %v814
  %vm825 = vcmask 517120
  %826 = vst.msk [vmem:[%s2 + $0x8] sm:$0x3] %vm825, %v821
  // Predicated region
  $region10: #{sparse_kernel_ft1d.1} parent=0 // pred_check
    _
  $region11: #{sparse_kernel_ft1d.1} parent=0 // pred_check_branch
    %828 = sbr.rel (0) target = $region13
  $region12: #{sparse_kernel_ft1d.1} parent=0 // pred_region
    _
  $region13: #{sparse_kernel_ft1d.1} parent=0 // pred_fallthru
    _
  // Predicated region
  $region14: #{sparse_kernel_ft1d.1} parent=0 // pred_check
    _
  $region15: #{sparse_kernel_ft1d.1} parent=0 // pred_check_branch
    %830 = sbr.rel (0) target = $region17
  $region16: #{sparse_kernel_ft1d.1} parent=0 // pred_region
    _
  $region17: #{sparse_kernel_ft1d.1} parent=0 // pred_fallthru
    _

</llo_original>
